<compile_context>
chip_gen: v7x
topology: tpu7x:2x2x1
jax: 0.10.0
libtpu: 0.0.40
codegen_flags: <defaults>
</compile_context>

<pallas_src>
import numpy as np
import jax
import jax.numpy as jnp
from jax.experimental import pallas as pl
from jax.experimental.pallas import tpu as pltpu

_LANE = 128  # TPU lane width; pad the fused output to a multiple of this.


def _round_up(x, m):
    return ((x + m - 1) // m) * m


def _nearest_indices(in_size, out_size):
    """PyTorch F.interpolate(mode='nearest') source indices (float32 scale math)."""
    scale = np.float32(in_size) / np.float32(out_size)
    dst = np.arange(out_size, dtype=np.float32)
    src = np.floor(dst * scale).astype(np.int64)
    return np.minimum(src, in_size - 1)


def _fused_gather_matrix(lb, backcast_size, lf, forecast_size, out_pad, dtype):
    """Block-diagonal one-hot gather matrix G (lb+lf, out_pad):
       [bcc | fcc] @ G == [nearest(bcc, back) | nearest(fcc, fore) | zeros_pad]."""
    g = np.zeros((lb + lf, out_pad), dtype=np.float32)
    sb = _nearest_indices(lb, backcast_size)
    g[sb, np.arange(backcast_size)] = 1.0
    sf = _nearest_indices(lf, forecast_size)
    g[lb + sf, backcast_size + np.arange(forecast_size)] = 1.0
    return jnp.asarray(g, dtype=dtype)


def _interp_kernel(x_ref, g_ref, out_ref):
    # Nearest interpolation == gather == one-hot matmul (exact: 0/1 weights,
    # f32 accumulation).  Single fused MXU matmul, lane-dense output store.
    out_ref[...] = jnp.dot(
        x_ref[...], g_ref[...], preferred_element_type=jnp.float32
    ).astype(out_ref.dtype)


def interpolation_basis(bcc, fcc, backcast_size, forecast_size):
    """bcc: (B, Lb), fcc: (B, Lf) -> (backcast, forecast).

    Matches PyTorch: returns (B, size) arrays for B > 1; for B == 1 the
    batch dim is squeezed away (PyTorch's .squeeze())."""
    B, lb = bcc.shape
    B2, lf = fcc.shape
    assert B == B2, "bcc and fcc must share the batch dimension"
    dtype = bcc.dtype

    total_out = backcast_size + forecast_size
    out_pad = max(_LANE, _round_up(total_out, _LANE))

    g = _fused_gather_matrix(lb, backcast_size, lf, forecast_size, out_pad, dtype)

    # Fuse the two inputs along the lane axis -> one matmul, one output slab.
    x = jnp.concatenate([bcc, fcc], axis=1)  # (B, lb + lf)
    k = lb + lf

    # Batch tile: multiple of the sublane packing for the dtype, capped so the
    # (double-buffered) tiles comfortably fit VMEM on every generation
    # (v7x physical VMEM is 64 MiB; these tiles are << 1 MiB).
    row_mult = 16 if dtype == jnp.bfloat16 else 8
    tb = min(512, _round_up(B, row_mult))
    b_pad = _round_up(B, tb)
    if b_pad != B:
        x = jnp.pad(x, ((0, b_pad - B), (0, 0)))

    itemsize = jnp.dtype(dtype).itemsize
    cost = pl.CostEstimate(
        flops=2 * b_pad * k * out_pad,
        transcendentals=0,
        bytes_accessed=(b_pad * k + k * out_pad + b_pad * out_pad) * itemsize,
    )

    out = pl.pallas_call(
        _interp_kernel,
        out_shape=jax.ShapeDtypeStruct((b_pad, out_pad), dtype),
        grid=(b_pad // tb,),
        in_specs=[
            pl.BlockSpec((tb, k), lambda i: (i, 0)),          # row tile of [bcc|fcc]
            pl.BlockSpec((k, out_pad), lambda i: (0, 0)),     # gather matrix, resident
        ],
        out_specs=pl.BlockSpec((tb, out_pad), lambda i: (i, 0)),
        compiler_params=pltpu.CompilerParams(
            dimension_semantics=("parallel",),                # 2x on v7x (2 TCs)
        ),
        cost_estimate=cost,
    )(x, g)

    backcast = out[:B, :backcast_size]
    forecast = out[:B, backcast_size:backcast_size + forecast_size]
    if B == 1:  # PyTorch .squeeze() drops the batch dim when B == 1
        backcast = backcast[0]
        forecast = forecast[0]
    return backcast, forecast


if __name__ == "__main__":
    key = jax.random.PRNGKey(0)
    k1, k2 = jax.random.split(key)

    # Small shapes consistent with NHITS theta coefficients.
    B, lb, lf = 8, 8, 4
    backcast_size, forecast_size = 16, 8

    bcc = jax.random.normal(k1, (B, lb), dtype=jnp.float32)
    fcc = jax.random.normal(k2, (B, lf), dtype=jnp.float32)

    backcast, forecast = interpolation_basis(bcc, fcc, backcast_size, forecast_size)
    jax.block_until_ready((backcast, forecast))

    # Reference: PyTorch nearest interpolation = gather with floor(j * L_in/L_out).
    def ref_nearest(x, size):
        x = np.asarray(x)
        idx = _nearest_indices(x.shape[1], size)
        return x[:, idx]

    np.testing.assert_allclose(
        np.asarray(backcast), ref_nearest(bcc, backcast_size), atol=1e-6
    )
    np.testing.assert_allclose(
        np.asarray(forecast), ref_nearest(fcc, forecast_size), atol=1e-6
    )
    assert backcast.shape == (B, backcast_size)
    assert forecast.shape == (B, forecast_size)

    print("KERNEL_OK")
</pallas_src>

<mosaic_0001>
module attributes {stable_mosaic.version = 11 : i64} {
  func.func @_interp_kernel(%arg0: i32, %arg1: memref<8x12xf32, #tpu.memory_space<vmem>>, %arg2: memref<12x128xf32, #tpu.memory_space<vmem>>, %arg3: memref<8x128xf32, #tpu.memory_space<vmem>>) attributes {dimension_semantics = [#tpu.dimension_semantics<parallel>], iteration_bounds = array<i64: 1>, scalar_prefetch = 0 : i64, scratch_operands = 0 : i64, tpu.core_type = #tpu.core_type<tc>, window_params = [{transform_indices = @transform_0, window_bounds = array<i64: 8, 12>}, {pipeline_mode = #tpu.pipeline_mode<synchronous>, transform_indices = @transform_1, window_bounds = array<i64: 12, 128>}, {transform_indices = @transform_2, window_bounds = array<i64: 8, 128>}]} {
    %c0 = arith.constant 0 : index
    %c0_0 = arith.constant 0 : index
    %0 = vector.load %arg1[%c0, %c0_0] : memref<8x12xf32, #tpu.memory_space<vmem>>, vector<8x12xf32>
    %c0_1 = arith.constant 0 : index
    %c0_2 = arith.constant 0 : index
    %1 = vector.load %arg2[%c0_1, %c0_2] : memref<12x128xf32, #tpu.memory_space<vmem>>, vector<12x128xf32>
    %cst = arith.constant dense<0.000000e+00> : vector<8x128xf32>
    %2 = tpu.matmul %0, %1, %cst {dimension_numbers = #tpu.dot_dimension_numbers<[1], [0], [0], [1], [0, 0, 1, 1], [], []>} : vector<8x12xf32>, vector<12x128xf32>, vector<8x128xf32> -> vector<8x128xf32>
    %c0_3 = arith.constant 0 : index
    %c0_4 = arith.constant 0 : index
    %3 = vector.load %arg3[%c0_3, %c0_4] : memref<8x128xf32, #tpu.memory_space<vmem>>, vector<8x128xf32>
    tpu.vector_store %arg3[%c0_3, %c0_4], %2 {strides = array<i32>} : memref<8x128xf32, #tpu.memory_space<vmem>>, vector<8x128xf32>,
    return
  }
  func.func @transform_0(%arg0: i32) -> (i32, i32) {
    %c0_i32 = arith.constant 0 : i32
    %c0_i32_0 = arith.constant 0 : i32
    return %arg0, %c0_i32 : i32, i32
  }
  func.func @transform_1(%arg0: i32) -> (i32, i32) {
    %c0_i32 = arith.constant 0 : i32
    %c0_i32_0 = arith.constant 0 : i32
    %c0_i32_1 = arith.constant 0 : i32
    return %c0_i32, %c0_i32_0 : i32, i32
  }
  func.func @transform_2(%arg0: i32) -> (i32, i32) {
    %c0_i32 = arith.constant 0 : i32
    %c0_i32_0 = arith.constant 0 : i32
    return %arg0, %c0_i32 : i32, i32
  }
}

</mosaic_0001>

<llo_original>
// kernel: tpu_custom_call.1
$region0: #{tpu_custom_call.1}
  #allocation0 [shape = 'u32[]', space=smem, size = 0x4, offset = 0x4, fixed_abs, tag = 'smem constant byte address 0x4 - core index']
  #allocation1 [shape = 'u32[144,128]{1,0:T(1,128)}', space=vmem, size = 0x12000, scoped, tag = 'internal scratch']
  %s0 = inlined_call_operand.hbm [shape: f32[8,12], index: 0, kind: input, shape index: {}]
  %s1 = inlined_call_operand.hbm [shape: f32[12,128], index: 1, kind: input, shape index: {}]
  %s2 = inlined_call_operand.hbm [shape: f32[8,128], index: 2, kind: output, shape index: {}]
  %s3 = sld [smem:[#allocation0]]
  $region26: #{tpu_custom_call.1} parent=0
    _
  %s5 = ssub.s32 1, %s3
  %s6 = scalar_select 0, %s5, %s3
  $region1: #{tpu_custom_call.1} parent=0
    #allocation2 [shape = 'u8[4096]{0}', space=vmem, size = 0x1000, scoped, tag = 'input window, operand 0, single buffered']
    #allocation3 [shape = 's32[1]{0}', space=sflag, size = 0x4, scoped, tag = 'scoped memory for tpu_custom_call.1']
    #allocation4 [shape = 's32[1]{0}', space=sflag, size = 0x4, scoped, tag = 'scoped memory for tpu_custom_call.1']
    #allocation5 [shape = 'u8[8192]{0}', space=vmem, size = 0x2000, scoped, tag = 'input window, operand 1, single buffered']
    #allocation6 [shape = 's32[1]{0}', space=sflag, size = 0x4, scoped, tag = 'scoped memory for tpu_custom_call.1']
    #allocation7 [shape = 'u8[4096]{0}', space=vmem, size = 0x1000, scoped, tag = 'output window, operand 0, single buffered']
    %7 = vsyncpa [#allocation3], 0
    %8 = vsyncpa [#allocation6], 0
    %9 = vsyncpa [#allocation4], 0
    // Predicated region
    $region2: #{tpu_custom_call.1} parent=1 // pred_check
      _
    $region3: #{tpu_custom_call.1} parent=1 // pred_check_branch
      %11 = sbr.rel (0) target = $region5
    $region4: #{tpu_custom_call.1} parent=1 // pred_region
      %s13 = ssub.s32 128, 128
      %14 = vsyncadd [#allocation3], %s13
      %s16 = sshll.u32 [#allocation2], 4
      %s17 = int_to_ptr.vmem [resolvable:$true] %s16
      %19 = dma.hbm_to_vmem [thread:$0]  %s0, 128, %s17, [#allocation3]
    $region5: #{tpu_custom_call.1} parent=1 // pred_fallthru
      _
    // Predicated region
    $region6: #{tpu_custom_call.1} parent=1 // pred_check
      _
    $region7: #{tpu_custom_call.1} parent=1 // pred_check_branch
      %21 = sbr.rel (0) target = $region9
    $region8: #{tpu_custom_call.1} parent=1 // pred_region
      %s23 = ssub.s32 256, 256
      %24 = vsyncadd [#allocation6], %s23
      %s25 = sshll.u32 [#allocation5], 4
      %s26 = int_to_ptr.vmem [resolvable:$true] %s25
      %31 = dma.hbm_to_vmem [thread:$0]  %s1, 256, %s26, [#allocation6], 128, 128, 8
    $region9: #{tpu_custom_call.1} parent=1 // pred_fallthru
      _
    // Predicated region
    $region10: #{tpu_custom_call.1} parent=1 // pred_check
      _
    $region11: #{tpu_custom_call.1} parent=1 // pred_check_branch
      %33 = sbr.rel (0) target = $region13
    $region12: #{tpu_custom_call.1} parent=1 // pred_region
      %34 = dma.done [#allocation3], 128
    $region13: #{tpu_custom_call.1} parent=1 // pred_fallthru
      _
    // Predicated region
    $region14: #{tpu_custom_call.1} parent=1 // pred_check
      _
    $region15: #{tpu_custom_call.1} parent=1 // pred_check_branch
      %36 = sbr.rel (0) target = $region17
    $region16: #{tpu_custom_call.1} parent=1 // pred_region
      %37 = dma.done [#allocation6], 256
    $region17: #{tpu_custom_call.1} parent=1 // pred_fallthru
      _
    %v38 = vld [vmem:[#allocation2] sm:$0xff]
    %v39 = vld [vmem:[#allocation5] sm:$0xff]
    %v40 = vld [vmem:[#allocation5 + $0x8] sm:$0xf]
    %vm41 = vcmask 97280
    %v43 = vsel %vm41, %v38, 0
    %vm45 = vcmask 1043456
    %v47 = vsel %vm45, %v40, 0
    %49 = vmatprep.subr.mxu0 0.0
    %50 = vmatpush1.msra.mxu0 %v39
    %51 = vmatprep.subr.mxu0 0.0
    %52 = vmatpush1.msra.mxu0 %v47
    %53 = vmatprep.subr.mxu0 0.0
    %54 = vmatpush1.msra.mxu0 0.0
    %55 = vmatprep.subr.mxu0 0.0
    %56 = vmatpush1.msra.mxu0 0.0
    %57 = vmatprep.subr.mxu0 0.0
    %58 = vmatpush1.msra.mxu0 0.0
    %59 = vmatprep.subr.mxu0 0.0
    %60 = vmatpush1.msra.mxu0 0.0
    %61 = vmatprep.subr.mxu0 0.0
    %62 = vmatpush1.msra.mxu0 0.0
    %63 = vmatprep.subr.mxu0 0.0
    %64 = vmatpush1.msra.mxu0 0.0
    %65 = vmatprep.subr.mxu0 0.0
    %66 = vmatpush1.msra.mxu0 0.0
    %67 = vmatprep.subr.mxu0 0.0
    %68 = vmatpush1.msra.mxu0 0.0
    %69 = vmatprep.subr.mxu0 0.0
    %70 = vmatpush1.msra.mxu0 0.0
    %71 = vmatprep.subr.mxu0 0.0
    %72 = vmatpush1.msra.mxu0 0.0
    %73 = vmatprep.subr.mxu0 0.0
    %74 = vmatpush1.msra.mxu0 0.0
    %75 = vmatprep.subr.mxu0 0.0
    %76 = vmatpush1.msra.mxu0 0.0
    %77 = vmatprep.subr.mxu0 0.0
    %78 = vmatpush1.msra.mxu0 0.0
    %79 = vmatprep.subr.mxu0 0.0
    %80 = vmatpush1.msra.mxu0 0.0
    %81 = vmatprep.subr.mxu0 0.0
    %82 = vmatpush1.msra.mxu0 0.0
    %83 = vmatprep.subr.mxu0 0.0
    %84 = vmatpush1.msra.mxu0 0.0
    %85 = vmatprep.subr.mxu0 0.0
    %86 = vmatpush1.msra.mxu0 0.0
    %87 = vmatprep.subr.mxu0 0.0
    %88 = vmatpush1.msra.mxu0 0.0
    %89 = vmatprep.subr.mxu0 0.0
    %90 = vmatpush1.msra.mxu0 0.0
    %91 = vmatprep.subr.mxu0 0.0
    %92 = vmatpush1.msra.mxu0 0.0
    %93 = vmatprep.subr.mxu0 0.0
    %94 = vmatpush1.msra.mxu0 0.0
    %95 = vmatprep.subr.mxu0 0.0
    %96 = vmatpush1.msra.mxu0 0.0
    %97 = vmatprep.subr.mxu0 0.0
    %98 = vmatpush1.msra.mxu0 0.0
    %99 = vmatprep.subr.mxu0 0.0
    %100 = vmatpush1.msra.mxu0 0.0
    %101 = vmatprep.subr.mxu0 0.0
    %102 = vmatpush1.msra.mxu0 0.0
    %103 = vmatprep.subr.mxu0 0.0
    %104 = vmatpush1.msra.mxu0 0.0
    %105 = vmatprep.subr.mxu0 0.0
    %106 = vmatpush1.msra.mxu0 0.0
    %107 = vmatprep.subr.mxu0 0.0
    %108 = vmatpush1.msra.mxu0 0.0
    %109 = vmatprep.subr.mxu0 0.0
    %110 = vmatpush1.msra.mxu0 0.0
    %111 = vmatprep.subr.mxu0 0.0
    %112 = vmatpush1.msra.mxu0 0.0
    %113 = vmatprep.mubr.f32.mxu0 0.0
    %114 = vmatmul.mubr.f32.gmra.mrb[0].mxu0 %v43
    %v115 = vpop.f32.mrb[0].mxu0
    %v116 = vadd.f32 0.0, %v115
    %v117 = vpop.f32.mrb[0].mxu0
    %118 = vdwg.mxu0
    %119 = vst [vmem:[#allocation7] sm:$0xff] %v116
    // Predicated region
    $region18: #{tpu_custom_call.1} parent=1 // pred_check
      _
    $region19: #{tpu_custom_call.1} parent=1 // pred_check_branch
      %121 = sbr.rel (0) target = $region21
    $region20: #{tpu_custom_call.1} parent=1 // pred_region
      %s123 = ssub.s32 128, 128
      %124 = vsyncadd [#allocation4], %s123
      %s126 = sshll.u32 [#allocation7], 4
      %s127 = int_to_ptr.vmem [resolvable:$true] %s126
      %129 = dma.vmem_to_hbm [thread:$0]  %s127, 128, %s2, [#allocation4]
    $region21: #{tpu_custom_call.1} parent=1 // pred_fallthru
      _
    // Predicated region
    $region22: #{tpu_custom_call.1} parent=1 // pred_check
      _
    $region23: #{tpu_custom_call.1} parent=1 // pred_check_branch
      %131 = sbr.rel (0) target = $region25
    $region24: #{tpu_custom_call.1} parent=1 // pred_region
      %132 = dma.done [#allocation4], 128
    $region25: #{tpu_custom_call.1} parent=1 // pred_fallthru
      _
    %133 = vsyncpa [#allocation3], 1
    %134 = vsyncpa [#allocation6], 1
    %135 = vsyncpa [#allocation4], 1

</llo_original>
